<compile_context>
chip_gen: v7x
topology: tpu7x:2x2x1
jax: 0.10.0
libtpu: 0.0.40
codegen_flags: <defaults>
</compile_context>

<pallas_src>
import functools

import jax
import jax.numpy as jnp
from jax.experimental import pallas as pl
from jax.experimental.pallas import tpu as pltpu


# ----------------------------------------------------------------------------
# Helpers
# ----------------------------------------------------------------------------
def _round_up(x: int, m: int) -> int:
    return ((x + m - 1) // m) * m


# ----------------------------------------------------------------------------
# Pallas kernel: the full MLP forward for one tile of batch rows
# ----------------------------------------------------------------------------
def _mlp_kernel(x_ref, w0_ref, b0_ref, wh_ref, bh_ref, wo_ref, bo_ref, o_ref,
                *, n_hidden: int):
    """Fused MLP forward on a (TILE_M, Din_pad) row tile.

    x_ref  : (TILE_M, Din_pad)        padded input rows
    w0_ref : (Din_pad, H_pad)         first Linear weight (transposed, padded)
    b0_ref : (1, H_pad)               first Linear bias
    wh_ref : (L, H_pad, H_pad)        stacked hidden Linear weights (L >= 1)
    bh_ref : (L, 1, H_pad)            stacked hidden biases
    wo_ref : (H_pad, C_pad)           output Linear weight
    bo_ref : (1, C_pad)               output Linear bias
    o_ref  : (TILE_M, C_pad)          padded logits
    """
    # Layer 0: Linear(input_dim, hidden_dim) + Sigmoid
    h = jax.nn.sigmoid(
        jnp.dot(x_ref[...], w0_ref[...], preferred_element_type=jnp.float32)
        + b0_ref[...])

    # Hidden layers: Linear(hidden, hidden) + Sigmoid  (static unroll)
    for l in range(n_hidden):
        h = jax.nn.sigmoid(
            jnp.dot(h, wh_ref[l], preferred_element_type=jnp.float32)
            + bh_ref[l])

    # Head: Linear(hidden_dim, num_classes)  (no activation)
    o_ref[...] = (jnp.dot(h, wo_ref[...], preferred_element_type=jnp.float32)
                  + bo_ref[...])


# ----------------------------------------------------------------------------
# Wrapper: pad to TPU-friendly shapes, tile the batch, call the kernel
# ----------------------------------------------------------------------------
def dnn_forward(x, params):
    """Equivalent of DNNModel.forward.  x: (B, input_dim) float32."""
    layers = params["layers"]               # list of (W, b) in PyTorch layout
    w0, b0 = layers[0]                      # (H, Din), (H,)
    wo, bo = layers[-1]                     # (C, H),   (C,)
    hidden_layers = layers[1:-1]            # each (H, H), (H,)
    n_hidden = len(hidden_layers)

    B, din = x.shape
    H = w0.shape[0]
    C = wo.shape[0]

    din_p = _round_up(din, 128)
    h_p = _round_up(H, 128)
    c_p = _round_up(C, 128)

    tile_m = min(256, _round_up(B, 8))
    b_p = _round_up(B, tile_m)

    f32 = jnp.float32

    # --- zero-pad inputs / weights (padded rows/cols contribute nothing) ----
    x_p = jnp.zeros((b_p, din_p), f32).at[:B, :din].set(x.astype(f32))

    w0_p = jnp.zeros((din_p, h_p), f32).at[:din, :H].set(w0.T.astype(f32))
    b0_p = jnp.zeros((1, h_p), f32).at[0, :H].set(b0.astype(f32))

    L = max(1, n_hidden)
    wh_p = jnp.zeros((L, h_p, h_p), f32)
    bh_p = jnp.zeros((L, 1, h_p), f32)
    for l, (w, b) in enumerate(hidden_layers):
        wh_p = wh_p.at[l, :H, :H].set(w.T.astype(f32))
        bh_p = bh_p.at[l, 0, :H].set(b.astype(f32))

    wo_p = jnp.zeros((h_p, c_p), f32).at[:H, :C].set(wo.T.astype(f32))
    bo_p = jnp.zeros((1, c_p), f32).at[0, :C].set(bo.astype(f32))

    # --- single fused pallas_call, tiled over batch rows --------------------
    grid = (b_p // tile_m,)
    out_p = pl.pallas_call(
        functools.partial(_mlp_kernel, n_hidden=n_hidden),
        out_shape=jax.ShapeDtypeStruct((b_p, c_p), f32),
        grid=grid,
        in_specs=[
            pl.BlockSpec((tile_m, din_p), lambda i: (i, 0)),      # x rows
            pl.BlockSpec((din_p, h_p), lambda i: (0, 0)),         # W0
            pl.BlockSpec((1, h_p), lambda i: (0, 0)),             # b0
            pl.BlockSpec((L, h_p, h_p), lambda i: (0, 0, 0)),     # hidden Ws
            pl.BlockSpec((L, 1, h_p), lambda i: (0, 0, 0)),       # hidden bs
            pl.BlockSpec((h_p, c_p), lambda i: (0, 0)),           # W_out
            pl.BlockSpec((1, c_p), lambda i: (0, 0)),             # b_out
        ],
        out_specs=pl.BlockSpec((tile_m, c_p), lambda i: (i, 0)),
        compiler_params=pltpu.CompilerParams(
            dimension_semantics=("parallel",)),   # rows are independent
    )(x_p, w0_p, b0_p, wh_p, bh_p, wo_p, bo_p)

    return out_p[:B, :C]


# ----------------------------------------------------------------------------
# Deterministic parameter construction (PyTorch nn.Linear default init shapes)
# ----------------------------------------------------------------------------
def init_params(key, input_dim, hidden_dim, num_classes, num_layers):
    def linear(key, fan_out, fan_in):
        k1, k2 = jax.random.split(key)
        bound = 1.0 / jnp.sqrt(jnp.float32(fan_in))
        w = jax.random.uniform(k1, (fan_out, fan_in), jnp.float32, -bound, bound)
        b = jax.random.uniform(k2, (fan_out,), jnp.float32, -bound, bound)
        return w, b

    layers = []
    key, k = jax.random.split(key)
    layers.append(linear(k, hidden_dim, input_dim))        # Linear(in, hidden)
    for _ in range(num_layers - 1):                        # Linear(hidden, hidden)
        key, k = jax.random.split(key)
        layers.append(linear(k, hidden_dim, hidden_dim))
    key, k = jax.random.split(key)
    layers.append(linear(k, num_classes, hidden_dim))      # Linear(hidden, classes)
    return {"layers": layers}


# ----------------------------------------------------------------------------
# Pure-JAX reference (for correctness check)
# ----------------------------------------------------------------------------
def dnn_reference(x, params):
    layers = params["layers"]
    h = x
    for w, b in layers[:-1]:
        h = jax.nn.sigmoid(h @ w.T + b)
    w, b = layers[-1]
    return h @ w.T + b


# ----------------------------------------------------------------------------
if __name__ == "__main__":
    B = 2
    input_dim, hidden_dim, num_classes, num_layers = 16, 32, 10, 4

    key = jax.random.PRNGKey(0)
    key, xk = jax.random.split(key)
    x = jax.random.normal(xk, (B, input_dim), jnp.float32)

    params = init_params(key, input_dim, hidden_dim, num_classes, num_layers)

    out = jax.jit(dnn_forward)(x, params)
    out = jax.block_until_ready(out)

    ref = dnn_reference(x, params)
    assert out.shape == (B, num_classes), out.shape
    assert jnp.allclose(out, ref, atol=1e-4, rtol=1e-4), \
        float(jnp.max(jnp.abs(out - ref)))

    print("KERNEL_OK")
</pallas_src>

<mosaic_0001>
module attributes {stable_mosaic.version = 11 : i64} {
  func.func @_mlp_kernel(%arg0: i32, %arg1: memref<8x128xf32, #tpu.memory_space<vmem>>, %arg2: memref<128x128xf32, #tpu.memory_space<vmem>>, %arg3: memref<1x128xf32, #tpu.memory_space<vmem>>, %arg4: memref<3x128x128xf32, #tpu.memory_space<vmem>>, %arg5: memref<3x1x128xf32, #tpu.memory_space<vmem>>, %arg6: memref<128x128xf32, #tpu.memory_space<vmem>>, %arg7: memref<1x128xf32, #tpu.memory_space<vmem>>, %arg8: memref<8x128xf32, #tpu.memory_space<vmem>>) attributes {dimension_semantics = [#tpu.dimension_semantics<parallel>], iteration_bounds = array<i64: 1>, scalar_prefetch = 0 : i64, scratch_operands = 0 : i64, tpu.core_type = #tpu.core_type<tc>, window_params = [{transform_indices = @transform_0, window_bounds = array<i64: 8, 128>}, {pipeline_mode = #tpu.pipeline_mode<synchronous>, transform_indices = @transform_1, window_bounds = array<i64: 128, 128>}, {pipeline_mode = #tpu.pipeline_mode<synchronous>, transform_indices = @transform_2, window_bounds = array<i64: 1, 128>}, {pipeline_mode = #tpu.pipeline_mode<synchronous>, transform_indices = @transform_3, window_bounds = array<i64: 3, 128, 128>}, {pipeline_mode = #tpu.pipeline_mode<synchronous>, transform_indices = @transform_4, window_bounds = array<i64: 3, 1, 128>}, {pipeline_mode = #tpu.pipeline_mode<synchronous>, transform_indices = @transform_5, window_bounds = array<i64: 128, 128>}, {pipeline_mode = #tpu.pipeline_mode<synchronous>, transform_indices = @transform_6, window_bounds = array<i64: 1, 128>}, {transform_indices = @transform_7, window_bounds = array<i64: 8, 128>}]} {
    %c0 = arith.constant 0 : index
    %c0_0 = arith.constant 0 : index
    %0 = vector.load %arg1[%c0, %c0_0] : memref<8x128xf32, #tpu.memory_space<vmem>>, vector<8x128xf32>
    %c0_1 = arith.constant 0 : index
    %c0_2 = arith.constant 0 : index
    %1 = vector.load %arg2[%c0_1, %c0_2] : memref<128x128xf32, #tpu.memory_space<vmem>>, vector<128x128xf32>
    %cst = arith.constant dense<0.000000e+00> : vector<8x128xf32>
    %2 = tpu.matmul %0, %1, %cst {dimension_numbers = #tpu.dot_dimension_numbers<[1], [0], [0], [1], [0, 0, 1, 1], [], []>} : vector<8x128xf32>, vector<128x128xf32>, vector<8x128xf32> -> vector<8x128xf32>
    %c0_3 = arith.constant 0 : index
    %c0_4 = arith.constant 0 : index
    %3 = vector.load %arg3[%c0_3, %c0_4] : memref<1x128xf32, #tpu.memory_space<vmem>>, vector<1x128xf32>
    %4 = vector.broadcast %3 : vector<1x128xf32> to vector<8x128xf32>
    %5 = arith.addf %2, %4 : vector<8x128xf32>
    %6 = arith.negf %5 : vector<8x128xf32>
    %7 = math.exp %6 : vector<8x128xf32>
    %cst_5 = arith.constant 1.000000e+00 : f32
    %8 = vector.broadcast %cst_5 : f32 to vector<8x128xf32>
    %9 = arith.addf %8, %7 : vector<8x128xf32>
    %10 = arith.divf %8, %9 : vector<8x128xf32>
    %c0_6 = arith.constant 0 : index
    %c0_7 = arith.constant 0 : index
    %c0_8 = arith.constant 0 : index
    %11 = vector.load %arg4[%c0_6, %c0_7, %c0_8] : memref<3x128x128xf32, #tpu.memory_space<vmem>>, vector<1x128x128xf32>
    %12 = vector.shape_cast %11 : vector<1x128x128xf32> to vector<128x128xf32>
    %cst_9 = arith.constant dense<0.000000e+00> : vector<8x128xf32>
    %13 = tpu.matmul %10, %12, %cst_9 {dimension_numbers = #tpu.dot_dimension_numbers<[1], [0], [0], [1], [0, 0, 1, 1], [], []>} : vector<8x128xf32>, vector<128x128xf32>, vector<8x128xf32> -> vector<8x128xf32>
    %c0_10 = arith.constant 0 : index
    %c0_11 = arith.constant 0 : index
    %c0_12 = arith.constant 0 : index
    %14 = vector.load %arg5[%c0_10, %c0_11, %c0_12] : memref<3x1x128xf32, #tpu.memory_space<vmem>>, vector<1x1x128xf32>
    %15 = vector.shape_cast %14 : vector<1x1x128xf32> to vector<1x128xf32>
    %16 = vector.broadcast %15 : vector<1x128xf32> to vector<8x128xf32>
    %17 = arith.addf %13, %16 : vector<8x128xf32>
    %18 = arith.negf %17 : vector<8x128xf32>
    %19 = math.exp %18 : vector<8x128xf32>
    %cst_13 = arith.constant 1.000000e+00 : f32
    %20 = vector.broadcast %cst_13 : f32 to vector<8x128xf32>
    %21 = arith.addf %20, %19 : vector<8x128xf32>
    %22 = arith.divf %20, %21 : vector<8x128xf32>
    %c1 = arith.constant 1 : index
    %c0_14 = arith.constant 0 : index
    %c0_15 = arith.constant 0 : index
    %23 = vector.load %arg4[%c1, %c0_14, %c0_15] : memref<3x128x128xf32, #tpu.memory_space<vmem>>, vector<1x128x128xf32>
    %24 = vector.shape_cast %23 : vector<1x128x128xf32> to vector<128x128xf32>
    %cst_16 = arith.constant dense<0.000000e+00> : vector<8x128xf32>
    %25 = tpu.matmul %22, %24, %cst_16 {dimension_numbers = #tpu.dot_dimension_numbers<[1], [0], [0], [1], [0, 0, 1, 1], [], []>} : vector<8x128xf32>, vector<128x128xf32>, vector<8x128xf32> -> vector<8x128xf32>
    %c1_17 = arith.constant 1 : index
    %c0_18 = arith.constant 0 : index
    %c0_19 = arith.constant 0 : index
    %26 = vector.load %arg5[%c1_17, %c0_18, %c0_19] : memref<3x1x128xf32, #tpu.memory_space<vmem>>, vector<1x1x128xf32>
    %27 = vector.shape_cast %26 : vector<1x1x128xf32> to vector<1x128xf32>
    %28 = vector.broadcast %27 : vector<1x128xf32> to vector<8x128xf32>
    %29 = arith.addf %25, %28 : vector<8x128xf32>
    %30 = arith.negf %29 : vector<8x128xf32>
    %31 = math.exp %30 : vector<8x128xf32>
    %cst_20 = arith.constant 1.000000e+00 : f32
    %32 = vector.broadcast %cst_20 : f32 to vector<8x128xf32>
    %33 = arith.addf %32, %31 : vector<8x128xf32>
    %34 = arith.divf %32, %33 : vector<8x128xf32>
    %c2 = arith.constant 2 : index
    %c0_21 = arith.constant 0 : index
    %c0_22 = arith.constant 0 : index
    %35 = vector.load %arg4[%c2, %c0_21, %c0_22] : memref<3x128x128xf32, #tpu.memory_space<vmem>>, vector<1x128x128xf32>
    %36 = vector.shape_cast %35 : vector<1x128x128xf32> to vector<128x128xf32>
    %cst_23 = arith.constant dense<0.000000e+00> : vector<8x128xf32>
    %37 = tpu.matmul %34, %36, %cst_23 {dimension_numbers = #tpu.dot_dimension_numbers<[1], [0], [0], [1], [0, 0, 1, 1], [], []>} : vector<8x128xf32>, vector<128x128xf32>, vector<8x128xf32> -> vector<8x128xf32>
    %c2_24 = arith.constant 2 : index
    %c0_25 = arith.constant 0 : index
    %c0_26 = arith.constant 0 : index
    %38 = vector.load %arg5[%c2_24, %c0_25, %c0_26] : memref<3x1x128xf32, #tpu.memory_space<vmem>>, vector<1x1x128xf32>
    %39 = vector.shape_cast %38 : vector<1x1x128xf32> to vector<1x128xf32>
    %40 = vector.broadcast %39 : vector<1x128xf32> to vector<8x128xf32>
    %41 = arith.addf %37, %40 : vector<8x128xf32>
    %42 = arith.negf %41 : vector<8x128xf32>
    %43 = math.exp %42 : vector<8x128xf32>
    %cst_27 = arith.constant 1.000000e+00 : f32
    %44 = vector.broadcast %cst_27 : f32 to vector<8x128xf32>
    %45 = arith.addf %44, %43 : vector<8x128xf32>
    %46 = arith.divf %44, %45 : vector<8x128xf32>
    %c0_28 = arith.constant 0 : index
    %c0_29 = arith.constant 0 : index
    %47 = vector.load %arg6[%c0_28, %c0_29] : memref<128x128xf32, #tpu.memory_space<vmem>>, vector<128x128xf32>
    %cst_30 = arith.constant dense<0.000000e+00> : vector<8x128xf32>
    %48 = tpu.matmul %46, %47, %cst_30 {dimension_numbers = #tpu.dot_dimension_numbers<[1], [0], [0], [1], [0, 0, 1, 1], [], []>} : vector<8x128xf32>, vector<128x128xf32>, vector<8x128xf32> -> vector<8x128xf32>
    %c0_31 = arith.constant 0 : index
    %c0_32 = arith.constant 0 : index
    %49 = vector.load %arg7[%c0_31, %c0_32] : memref<1x128xf32, #tpu.memory_space<vmem>>, vector<1x128xf32>
    %50 = vector.broadcast %49 : vector<1x128xf32> to vector<8x128xf32>
    %51 = arith.addf %48, %50 : vector<8x128xf32>
    %c0_33 = arith.constant 0 : index
    %c0_34 = arith.constant 0 : index
    %52 = vector.load %arg8[%c0_33, %c0_34] : memref<8x128xf32, #tpu.memory_space<vmem>>, vector<8x128xf32>
    tpu.vector_store %arg8[%c0_33, %c0_34], %51 {strides = array<i32>} : memref<8x128xf32, #tpu.memory_space<vmem>>, vector<8x128xf32>,
    return
  }
  func.func @transform_0(%arg0: i32) -> (i32, i32) {
    %c0_i32 = arith.constant 0 : i32
    %c0_i32_0 = arith.constant 0 : i32
    return %arg0, %c0_i32 : i32, i32
  }
  func.func @transform_1(%arg0: i32) -> (i32, i32) {
    %c0_i32 = arith.constant 0 : i32
    %c0_i32_0 = arith.constant 0 : i32
    %c0_i32_1 = arith.constant 0 : i32
    return %c0_i32, %c0_i32_0 : i32, i32
  }
  func.func @transform_2(%arg0: i32) -> (i32, i32) {
    %c0_i32 = arith.constant 0 : i32
    %c0_i32_0 = arith.constant 0 : i32
    %c0_i32_1 = arith.constant 0 : i32
    return %c0_i32, %c0_i32_0 : i32, i32
  }
  func.func @transform_3(%arg0: i32) -> (i32, i32, i32) {
    %c0_i32 = arith.constant 0 : i32
    %c0_i32_0 = arith.constant 0 : i32
    %c0_i32_1 = arith.constant 0 : i32
    %c0_i32_2 = arith.constant 0 : i32
    return %c0_i32, %c0_i32_0, %c0_i32_1 : i32, i32, i32
  }
  func.func @transform_4(%arg0: i32) -> (i32, i32, i32) {
    %c0_i32 = arith.constant 0 : i32
    %c0_i32_0 = arith.constant 0 : i32
    %c0_i32_1 = arith.constant 0 : i32
    %c0_i32_2 = arith.constant 0 : i32
    return %c0_i32, %c0_i32_0, %c0_i32_1 : i32, i32, i32
  }
  func.func @transform_5(%arg0: i32) -> (i32, i32) {
    %c0_i32 = arith.constant 0 : i32
    %c0_i32_0 = arith.constant 0 : i32
    %c0_i32_1 = arith.constant 0 : i32
    return %c0_i32, %c0_i32_0 : i32, i32
  }
  func.func @transform_6(%arg0: i32) -> (i32, i32) {
    %c0_i32 = arith.constant 0 : i32
    %c0_i32_0 = arith.constant 0 : i32
    %c0_i32_1 = arith.constant 0 : i32
    return %c0_i32, %c0_i32_0 : i32, i32
  }
  func.func @transform_7(%arg0: i32) -> (i32, i32) {
    %c0_i32 = arith.constant 0 : i32
    %c0_i32_0 = arith.constant 0 : i32
    return %arg0, %c0_i32 : i32, i32
  }
}

</mosaic_0001>

<llo_original>
// kernel: dnn_forward.1
$region0: #{dnn_forward.1}
  #allocation0 [shape = 'u32[]', space=smem, size = 0x4, offset = 0x4, fixed_abs, tag = 'smem constant byte address 0x4 - core index']
  #allocation1 [shape = 'u32[144,128]{1,0:T(1,128)}', space=vmem, size = 0x12000, scoped, tag = 'internal scratch']
  %s0 = inlined_call_operand.vmem [shape: f32[8,128], index: 0, kind: input, shape index: {}]
  %s1 = inlined_call_operand.vmem [shape: f32[128,128], index: 1, kind: input, shape index: {}]
  %s2 = inlined_call_operand.vmem [shape: f32[1,128], index: 2, kind: input, shape index: {}]
  %s3 = inlined_call_operand.vmem [shape: f32[3,128,128], index: 3, kind: input, shape index: {}]
  %s4 = inlined_call_operand.vmem [shape: f32[3,1,128], index: 4, kind: input, shape index: {}]
  %s5 = inlined_call_operand.vmem [shape: f32[128,128], index: 5, kind: input, shape index: {}]
  %s6 = inlined_call_operand.vmem [shape: f32[1,128], index: 6, kind: input, shape index: {}]
  %s7 = inlined_call_operand.vmem [shape: f32[8,128], index: 7, kind: output, shape index: {}]
  %s8 = sld [smem:[#allocation0]]
  $region38: #{dnn_forward.1} parent=0
    _
  %s10 = ssub.s32 1, %s8
  %s11 = scalar_select 0, %s10, %s8
  // Predicated region
  $region2: #{dnn_forward.1} parent=0 // pred_check
    _
  $region3: #{dnn_forward.1} parent=0 // pred_check_branch
    %13 = sbr.rel (0) target = $region5
  $region4: #{dnn_forward.1} parent=0 // pred_region
    _
  $region5: #{dnn_forward.1} parent=0 // pred_fallthru
    _
  // Predicated region
  $region6: #{dnn_forward.1} parent=0 // pred_check
    _
  $region7: #{dnn_forward.1} parent=0 // pred_check_branch
    %15 = sbr.rel (0) target = $region9
  $region8: #{dnn_forward.1} parent=0 // pred_region
    _
  $region9: #{dnn_forward.1} parent=0 // pred_fallthru
    _
  // Predicated region
  $region10: #{dnn_forward.1} parent=0 // pred_check
    _
  $region11: #{dnn_forward.1} parent=0 // pred_check_branch
    %17 = sbr.rel (0) target = $region13
  $region12: #{dnn_forward.1} parent=0 // pred_region
    _
  $region13: #{dnn_forward.1} parent=0 // pred_fallthru
    _
  // Predicated region
  $region14: #{dnn_forward.1} parent=0 // pred_check
    _
  $region15: #{dnn_forward.1} parent=0 // pred_check_branch
    %19 = sbr.rel (0) target = $region17
  $region16: #{dnn_forward.1} parent=0 // pred_region
    _
  $region17: #{dnn_forward.1} parent=0 // pred_fallthru
    _
  // Predicated region
  $region18: #{dnn_forward.1} parent=0 // pred_check
    _
  $region19: #{dnn_forward.1} parent=0 // pred_check_branch
    %21 = sbr.rel (0) target = $region21
  $region20: #{dnn_forward.1} parent=0 // pred_region
    _
  $region21: #{dnn_forward.1} parent=0 // pred_fallthru
    _
  // Predicated region
  $region22: #{dnn_forward.1} parent=0 // pred_check
    _
  $region23: #{dnn_forward.1} parent=0 // pred_check_branch
    %23 = sbr.rel (0) target = $region25
  $region24: #{dnn_forward.1} parent=0 // pred_region
    _
  $region25: #{dnn_forward.1} parent=0 // pred_fallthru
    _
  // Predicated region
  $region26: #{dnn_forward.1} parent=0 // pred_check
    _
  $region27: #{dnn_forward.1} parent=0 // pred_check_branch
    %25 = sbr.rel (0) target = $region29
  $region28: #{dnn_forward.1} parent=0 // pred_region
    _
  $region29: #{dnn_forward.1} parent=0 // pred_fallthru
    _
  %v26 = vld [vmem:[%s0] sm:$0xff]
  %v27 = vld [vmem:[%s1] sm:$0xff]
  %v28 = vld [vmem:[%s1 + $0x8] sm:$0xff]
  %v29 = vld [vmem:[%s1 + $0x10] sm:$0xff]
  %v30 = vld [vmem:[%s1 + $0x18] sm:$0xff]
  %v31 = vld [vmem:[%s1 + $0x20] sm:$0xff]
  %v32 = vld [vmem:[%s1 + $0x28] sm:$0xff]
  %v33 = vld [vmem:[%s1 + $0x30] sm:$0xff]
  %v34 = vld [vmem:[%s1 + $0x38] sm:$0xff]
  %v35 = vld [vmem:[%s1 + $0x40] sm:$0xff]
  %v36 = vld [vmem:[%s1 + $0x48] sm:$0xff]
  %v37 = vld [vmem:[%s1 + $0x50] sm:$0xff]
  %v38 = vld [vmem:[%s1 + $0x58] sm:$0xff]
  %v39 = vld [vmem:[%s1 + $0x60] sm:$0xff]
  %v40 = vld [vmem:[%s1 + $0x68] sm:$0xff]
  %v41 = vld [vmem:[%s1 + $0x70] sm:$0xff]
  %v42 = vld [vmem:[%s1 + $0x78] sm:$0xff]
  %v43 = vld [vmem:[%s2] sm:$0x1]
  %v45 = vlaneseq
  %v46 = vshrl.u32 %v45, 7
  %v47 = vsub.s32 0, %v46
  %v48 = vrot.slane %v43, %v47
  %50 = vmatprep.subr.mxu0 0.0
  %51 = vmatpush1.msra.mxu0 %v27
  %52 = vmatprep.subr.mxu0 0.0
  %53 = vmatpush1.msra.mxu0 %v28
  %54 = vmatprep.subr.mxu0 0.0
  %55 = vmatpush1.msra.mxu0 %v29
  %56 = vmatprep.subr.mxu0 0.0
  %57 = vmatpush1.msra.mxu0 %v30
  %58 = vmatprep.subr.mxu0 0.0
  %59 = vmatpush1.msra.mxu0 %v31
  %60 = vmatprep.subr.mxu0 0.0
  %61 = vmatpush1.msra.mxu0 %v32
  %62 = vmatprep.subr.mxu0 0.0
  %63 = vmatpush1.msra.mxu0 %v33
  %64 = vmatprep.subr.mxu0 0.0
  %65 = vmatpush1.msra.mxu0 %v34
  %66 = vmatprep.subr.mxu0 0.0
  %67 = vmatpush1.msra.mxu0 %v35
  %68 = vmatprep.subr.mxu0 0.0
  %69 = vmatpush1.msra.mxu0 %v36
  %70 = vmatprep.subr.mxu0 0.0
  %71 = vmatpush1.msra.mxu0 %v37
  %72 = vmatprep.subr.mxu0 0.0
  %73 = vmatpush1.msra.mxu0 %v38
  %74 = vmatprep.subr.mxu0 0.0
  %75 = vmatpush1.msra.mxu0 %v39
  %76 = vmatprep.subr.mxu0 0.0
  %77 = vmatpush1.msra.mxu0 %v40
  %78 = vmatprep.subr.mxu0 0.0
  %79 = vmatpush1.msra.mxu0 %v41
  %80 = vmatprep.subr.mxu0 0.0
  %81 = vmatpush1.msra.mxu0 %v42
  %82 = vmatprep.subr.mxu0 0.0
  %83 = vmatpush1.msra.mxu0 0.0
  %84 = vmatprep.subr.mxu0 0.0
  %85 = vmatpush1.msra.mxu0 0.0
  %86 = vmatprep.subr.mxu0 0.0
  %87 = vmatpush1.msra.mxu0 0.0
  %88 = vmatprep.subr.mxu0 0.0
  %89 = vmatpush1.msra.mxu0 0.0
  %90 = vmatprep.subr.mxu0 0.0
  %91 = vmatpush1.msra.mxu0 0.0
  %92 = vmatprep.subr.mxu0 0.0
  %93 = vmatpush1.msra.mxu0 0.0
  %94 = vmatprep.subr.mxu0 0.0
  %95 = vmatpush1.msra.mxu0 0.0
  %96 = vmatprep.subr.mxu0 0.0
  %97 = vmatpush1.msra.mxu0 0.0
  %98 = vmatprep.subr.mxu0 0.0
  %99 = vmatpush1.msra.mxu0 0.0
  %100 = vmatprep.subr.mxu0 0.0
  %101 = vmatpush1.msra.mxu0 0.0
  %102 = vmatprep.subr.mxu0 0.0
  %103 = vmatpush1.msra.mxu0 0.0
  %104 = vmatprep.subr.mxu0 0.0
  %105 = vmatpush1.msra.mxu0 0.0
  %106 = vmatprep.subr.mxu0 0.0
  %107 = vmatpush1.msra.mxu0 0.0
  %108 = vmatprep.subr.mxu0 0.0
  %109 = vmatpush1.msra.mxu0 0.0
  %110 = vmatprep.subr.mxu0 0.0
  %111 = vmatpush1.msra.mxu0 0.0
  %112 = vmatprep.subr.mxu0 0.0
  %113 = vmatpush1.msra.mxu0 0.0
  %114 = vmatprep.mubr.f32.mxu0 0.0
  %115 = vmatmul.mubr.f32.gmra.mrb[0].mxu0 %v26
  %v116 = vpop.f32.mrb[0].mxu0
  %v117 = vadd.f32 %v48, %v116
  %v118 = vpop.f32.mrb[0].mxu0
  %119 = vdwg.mxu0
  %v120 = vxor.u32 %v117, 2147483648
  %v121 = vmul.f32 %v120, 1.442695
  %v122 = vpow.pop %v121
  %v123 = vadd.f32 %v122, 1.0
  %v124 = vrcp.pop %v123
  %v125 = vmul.f32 1.0, %v124
  %v126 = vld [vmem:[%s3] sm:$0xff]
  %v127 = vld [vmem:[%s3 + $0x8] sm:$0xff]
  %v128 = vld [vmem:[%s3 + $0x10] sm:$0xff]
  %v129 = vld [vmem:[%s3 + $0x18] sm:$0xff]
  %v130 = vld [vmem:[%s3 + $0x20] sm:$0xff]
  %v131 = vld [vmem:[%s3 + $0x28] sm:$0xff]
  %v132 = vld [vmem:[%s3 + $0x30] sm:$0xff]
  %v133 = vld [vmem:[%s3 + $0x38] sm:$0xff]
  %v134 = vld [vmem:[%s3 + $0x40] sm:$0xff]
  %v135 = vld [vmem:[%s3 + $0x48] sm:$0xff]
  %v136 = vld [vmem:[%s3 + $0x50] sm:$0xff]
  %v137 = vld [vmem:[%s3 + $0x58] sm:$0xff]
  %v138 = vld [vmem:[%s3 + $0x60] sm:$0xff]
  %v139 = vld [vmem:[%s3 + $0x68] sm:$0xff]
  %v140 = vld [vmem:[%s3 + $0x70] sm:$0xff]
  %v141 = vld [vmem:[%s3 + $0x78] sm:$0xff]
  %v142 = vld [vmem:[%s4] sm:$0x1]
  %v144 = vlaneseq
  %v145 = vshrl.u32 %v144, 7
  %v146 = vsub.s32 0, %v145
  %v147 = vrot.slane %v142, %v146
  %149 = vmatprep.subr.mxu0 0.0
  %150 = vmatpush1.msra.mxu0 %v126
  %151 = vmatprep.subr.mxu0 0.0
  %152 = vmatpush1.msra.mxu0 %v127
  %153 = vmatprep.subr.mxu0 0.0
  %154 = vmatpush1.msra.mxu0 %v128
  %155 = vmatprep.subr.mxu0 0.0
  %156 = vmatpush1.msra.mxu0 %v129
  %157 = vmatprep.subr.mxu0 0.0
  %158 = vmatpush1.msra.mxu0 %v130
  %159 = vmatprep.subr.mxu0 0.0
  %160 = vmatpush1.msra.mxu0 %v131
  %161 = vmatprep.subr.mxu0 0.0
  %162 = vmatpush1.msra.mxu0 %v132
  %163 = vmatprep.subr.mxu0 0.0
  %164 = vmatpush1.msra.mxu0 %v133
  %165 = vmatprep.subr.mxu0 0.0
  %166 = vmatpush1.msra.mxu0 %v134
  %167 = vmatprep.subr.mxu0 0.0
  %168 = vmatpush1.msra.mxu0 %v135
  %169 = vmatprep.subr.mxu0 0.0
  %170 = vmatpush1.msra.mxu0 %v136
  %171 = vmatprep.subr.mxu0 0.0
  %172 = vmatpush1.msra.mxu0 %v137
  %173 = vmatprep.subr.mxu0 0.0
  %174 = vmatpush1.msra.mxu0 %v138
  %175 = vmatprep.subr.mxu0 0.0
  %176 = vmatpush1.msra.mxu0 %v139
  %177 = vmatprep.subr.mxu0 0.0
  %178 = vmatpush1.msra.mxu0 %v140
  %179 = vmatprep.subr.mxu0 0.0
  %180 = vmatpush1.msra.mxu0 %v141
  %181 = vmatprep.subr.mxu0 0.0
  %182 = vmatpush1.msra.mxu0 0.0
  %183 = vmatprep.subr.mxu0 0.0
  %184 = vmatpush1.msra.mxu0 0.0
  %185 = vmatprep.subr.mxu0 0.0
  %186 = vmatpush1.msra.mxu0 0.0
  %187 = vmatprep.subr.mxu0 0.0
  %188 = vmatpush1.msra.mxu0 0.0
  %189 = vmatprep.subr.mxu0 0.0
  %190 = vmatpush1.msra.mxu0 0.0
  %191 = vmatprep.subr.mxu0 0.0
  %192 = vmatpush1.msra.mxu0 0.0
  %193 = vmatprep.subr.mxu0 0.0
  %194 = vmatpush1.msra.mxu0 0.0
  %195 = vmatprep.subr.mxu0 0.0
  %196 = vmatpush1.msra.mxu0 0.0
  %197 = vmatprep.subr.mxu0 0.0
  %198 = vmatpush1.msra.mxu0 0.0
  %199 = vmatprep.subr.mxu0 0.0
  %200 = vmatpush1.msra.mxu0 0.0
  %201 = vmatprep.subr.mxu0 0.0
  %202 = vmatpush1.msra.mxu0 0.0
  %203 = vmatprep.subr.mxu0 0.0
  %204 = vmatpush1.msra.mxu0 0.0
  %205 = vmatprep.subr.mxu0 0.0
  %206 = vmatpush1.msra.mxu0 0.0
  %207 = vmatprep.subr.mxu0 0.0
  %208 = vmatpush1.msra.mxu0 0.0
  %209 = vmatprep.subr.mxu0 0.0
  %210 = vmatpush1.msra.mxu0 0.0
  %211 = vmatprep.subr.mxu0 0.0
  %212 = vmatpush1.msra.mxu0 0.0
  %213 = vmatprep.mubr.f32.mxu0 0.0
  %214 = vmatmul.mubr.f32.gmra.mrb[0].mxu0 %v125
  %v215 = vpop.f32.mrb[0].mxu0
  %v216 = vadd.f32 %v147, %v215
  %v217 = vpop.f32.mrb[0].mxu0
  %218 = vdwg.mxu0
  %v219 = vxor.u32 %v216, 2147483648
  %v220 = vmul.f32 %v219, 1.442695
  %v221 = vpow.pop %v220
  %v222 = vadd.f32 %v221, 1.0
  %v223 = vrcp.pop %v222
  %v224 = vmul.f32 1.0, %v223
  %s225 = scalar_lea.vmem %s3, 128
  %v226 = vld [vmem:[%s225] sm:$0xff]
  %v227 = vld [vmem:[%s225 + $0x8] sm:$0xff]
  %v228 = vld [vmem:[%s225 + $0x10] sm:$0xff]
  %v229 = vld [vmem:[%s225 + $0x18] sm:$0xff]
  %v230 = vld [vmem:[%s225 + $0x20] sm:$0xff]
  %v231 = vld [vmem:[%s225 + $0x28] sm:$0xff]
  %v232 = vld [vmem:[%s225 + $0x30] sm:$0xff]
  %v233 = vld [vmem:[%s225 + $0x38] sm:$0xff]
  %v234 = vld [vmem:[%s225 + $0x40] sm:$0xff]
  %v235 = vld [vmem:[%s225 + $0x48] sm:$0xff]
  %v236 = vld [vmem:[%s225 + $0x50] sm:$0xff]
  %v237 = vld [vmem:[%s225 + $0x58] sm:$0xff]
  %v238 = vld [vmem:[%s225 + $0x60] sm:$0xff]
  %v239 = vld [vmem:[%s225 + $0x68] sm:$0xff]
  %v240 = vld [vmem:[%s225 + $0x70] sm:$0xff]
  %v241 = vld [vmem:[%s225 + $0x78] sm:$0xff]
  %s242 = scalar_lea.vmem %s4, 1
  %v243 = vld [vmem:[%s242] sm:$0x1]
  %v245 = vlaneseq
  %v246 = vshrl.u32 %v245, 7
  %v247 = vsub.s32 0, %v246
  %v248 = vrot.slane %v243, %v247
  %250 = vmatprep.subr.mxu0 0.0
  %251 = vmatpush1.msra.mxu0 %v226
  %252 = vmatprep.subr.mxu0 0.0
  %253 = vmatpush1.msra.mxu0 %v227
  %254 = vmatprep.subr.mxu0 0.0
  %255 = vmatpush1.msra.mxu0 %v228
  %256 = vmatprep.subr.mxu0 0.0
  %257 = vmatpush1.msra.mxu0 %v229
  %258 = vmatprep.subr.mxu0 0.0
  %259 = vmatpush1.msra.mxu0 %v230
  %260 = vmatprep.subr.mxu0 0.0
  %261 = vmatpush1.msra.mxu0 %v231
  %262 = vmatprep.subr.mxu0 0.0
  %263 = vmatpush1.msra.mxu0 %v232
  %264 = vmatprep.subr.mxu0 0.0
  %265 = vmatpush1.msra.mxu0 %v233
  %266 = vmatprep.subr.mxu0 0.0
  %267 = vmatpush1.msra.mxu0 %v234
  %268 = vmatprep.subr.mxu0 0.0
  %269 = vmatpush1.msra.mxu0 %v235
  %270 = vmatprep.subr.mxu0 0.0
  %271 = vmatpush1.msra.mxu0 %v236
  %272 = vmatprep.subr.mxu0 0.0
  %273 = vmatpush1.msra.mxu0 %v237
  %274 = vmatprep.subr.mxu0 0.0
  %275 = vmatpush1.msra.mxu0 %v238
  %276 = vmatprep.subr.mxu0 0.0
  %277 = vmatpush1.msra.mxu0 %v239
  %278 = vmatprep.subr.mxu0 0.0
  %279 = vmatpush1.msra.mxu0 %v240
  %280 = vmatprep.subr.mxu0 0.0
  %281 = vmatpush1.msra.mxu0 %v241
  %282 = vmatprep.subr.mxu0 0.0
  %283 = vmatpush1.msra.mxu0 0.0
  %284 = vmatprep.subr.mxu0 0.0
  %285 = vmatpush1.msra.mxu0 0.0
  %286 = vmatprep.subr.mxu0 0.0
  %287 = vmatpush1.msra.mxu0 0.0
  %288 = vmatprep.subr.mxu0 0.0
  %289 = vmatpush1.msra.mxu0 0.0
  %290 = vmatprep.subr.mxu0 0.0
  %291 = vmatpush1.msra.mxu0 0.0
  %292 = vmatprep.subr.mxu0 0.0
  %293 = vmatpush1.msra.mxu0 0.0
  %294 = vmatprep.subr.mxu0 0.0
  %295 = vmatpush1.msra.mxu0 0.0
  %296 = vmatprep.subr.mxu0 0.0
  %297 = vmatpush1.msra.mxu0 0.0
  %298 = vmatprep.subr.mxu0 0.0
  %299 = vmatpush1.msra.mxu0 0.0
  %300 = vmatprep.subr.mxu0 0.0
  %301 = vmatpush1.msra.mxu0 0.0
  %302 = vmatprep.subr.mxu0 0.0
  %303 = vmatpush1.msra.mxu0 0.0
  %304 = vmatprep.subr.mxu0 0.0
  %305 = vmatpush1.msra.mxu0 0.0
  %306 = vmatprep.subr.mxu0 0.0
  %307 = vmatpush1.msra.mxu0 0.0
  %308 = vmatprep.subr.mxu0 0.0
  %309 = vmatpush1.msra.mxu0 0.0
  %310 = vmatprep.subr.mxu0 0.0
  %311 = vmatpush1.msra.mxu0 0.0
  %312 = vmatprep.subr.mxu0 0.0
  %313 = vmatpush1.msra.mxu0 0.0
  %314 = vmatprep.mubr.f32.mxu0 0.0
  %315 = vmatmul.mubr.f32.gmra.mrb[0].mxu0 %v224
  %v316 = vpop.f32.mrb[0].mxu0
  %v317 = vadd.f32 %v248, %v316
  %v318 = vpop.f32.mrb[0].mxu0
  %319 = vdwg.mxu0
  %v320 = vxor.u32 %v317, 2147483648
  %v321 = vmul.f32 %v320, 1.442695
  %v322 = vpow.pop %v321
  %v323 = vadd.f32 %v322, 1.0
  %v324 = vrcp.pop %v323
  %v325 = vmul.f32 1.0, %v324
  %s326 = scalar_lea.vmem %s3, 256
  %v327 = vld [vmem:[%s326] sm:$0xff]
  %v328 = vld [vmem:[%s326 + $0x8] sm:$0xff]
  %v329 = vld [vmem:[%s326 + $0x10] sm:$0xff]
  %v330 = vld [vmem:[%s326 + $0x18] sm:$0xff]
  %v331 = vld [vmem:[%s326 + $0x20] sm:$0xff]
  %v332 = vld [vmem:[%s326 + $0x28] sm:$0xff]
  %v333 = vld [vmem:[%s326 + $0x30] sm:$0xff]
  %v334 = vld [vmem:[%s326 + $0x38] sm:$0xff]
  %v335 = vld [vmem:[%s326 + $0x40] sm:$0xff]
  %v336 = vld [vmem:[%s326 + $0x48] sm:$0xff]
  %v337 = vld [vmem:[%s326 + $0x50] sm:$0xff]
  %v338 = vld [vmem:[%s326 + $0x58] sm:$0xff]
  %v339 = vld [vmem:[%s326 + $0x60] sm:$0xff]
  %v340 = vld [vmem:[%s326 + $0x68] sm:$0xff]
  %v341 = vld [vmem:[%s326 + $0x70] sm:$0xff]
  %v342 = vld [vmem:[%s326 + $0x78] sm:$0xff]
  %s343 = scalar_lea.vmem %s4, 2
  %v344 = vld [vmem:[%s343] sm:$0x1]
  %v346 = vlaneseq
  %v347 = vshrl.u32 %v346, 7
  %v348 = vsub.s32 0, %v347
  %v349 = vrot.slane %v344, %v348
  %351 = vmatprep.subr.mxu0 0.0
  %352 = vmatpush1.msra.mxu0 %v327
  %353 = vmatprep.subr.mxu0 0.0
  %354 = vmatpush1.msra.mxu0 %v328
  %355 = vmatprep.subr.mxu0 0.0
  %356 = vmatpush1.msra.mxu0 %v329
  %357 = vmatprep.subr.mxu0 0.0
  %358 = vmatpush1.msra.mxu0 %v330
  %359 = vmatprep.subr.mxu0 0.0
  %360 = vmatpush1.msra.mxu0 %v331
  %361 = vmatprep.subr.mxu0 0.0
  %362 = vmatpush1.msra.mxu0 %v332
  %363 = vmatprep.subr.mxu0 0.0
  %364 = vmatpush1.msra.mxu0 %v333
  %365 = vmatprep.subr.mxu0 0.0
  %366 = vmatpush1.msra.mxu0 %v334
  %367 = vmatprep.subr.mxu0 0.0
  %368 = vmatpush1.msra.mxu0 %v335
  %369 = vmatprep.subr.mxu0 0.0
  %370 = vmatpush1.msra.mxu0 %v336
  %371 = vmatprep.subr.mxu0 0.0
  %372 = vmatpush1.msra.mxu0 %v337
  %373 = vmatprep.subr.mxu0 0.0
  %374 = vmatpush1.msra.mxu0 %v338
  %375 = vmatprep.subr.mxu0 0.0
  %376 = vmatpush1.msra.mxu0 %v339
  %377 = vmatprep.subr.mxu0 0.0
  %378 = vmatpush1.msra.mxu0 %v340
  %379 = vmatprep.subr.mxu0 0.0
  %380 = vmatpush1.msra.mxu0 %v341
  %381 = vmatprep.subr.mxu0 0.0
  %382 = vmatpush1.msra.mxu0 %v342
  %383 = vmatprep.subr.mxu0 0.0
  %384 = vmatpush1.msra.mxu0 0.0
  %385 = vmatprep.subr.mxu0 0.0
  %386 = vmatpush1.msra.mxu0 0.0
  %387 = vmatprep.subr.mxu0 0.0
  %388 = vmatpush1.msra.mxu0 0.0
  %389 = vmatprep.subr.mxu0 0.0
  %390 = vmatpush1.msra.mxu0 0.0
  %391 = vmatprep.subr.mxu0 0.0
  %392 = vmatpush1.msra.mxu0 0.0
  %393 = vmatprep.subr.mxu0 0.0
  %394 = vmatpush1.msra.mxu0 0.0
  %395 = vmatprep.subr.mxu0 0.0
  %396 = vmatpush1.msra.mxu0 0.0
  %397 = vmatprep.subr.mxu0 0.0
  %398 = vmatpush1.msra.mxu0 0.0
  %399 = vmatprep.subr.mxu0 0.0
  %400 = vmatpush1.msra.mxu0 0.0
  %401 = vmatprep.subr.mxu0 0.0
  %402 = vmatpush1.msra.mxu0 0.0
  %403 = vmatprep.subr.mxu0 0.0
  %404 = vmatpush1.msra.mxu0 0.0
  %405 = vmatprep.subr.mxu0 0.0
  %406 = vmatpush1.msra.mxu0 0.0
  %407 = vmatprep.subr.mxu0 0.0
  %408 = vmatpush1.msra.mxu0 0.0
  %409 = vmatprep.subr.mxu0 0.0
  %410 = vmatpush1.msra.mxu0 0.0
  %411 = vmatprep.subr.mxu0 0.0
  %412 = vmatpush1.msra.mxu0 0.0
  %413 = vmatprep.subr.mxu0 0.0
  %414 = vmatpush1.msra.mxu0 0.0
  %415 = vmatprep.mubr.f32.mxu0 0.0
  %416 = vmatmul.mubr.f32.gmra.mrb[0].mxu0 %v325
  %v417 = vpop.f32.mrb[0].mxu0
  %v418 = vadd.f32 %v349, %v417
  %v419 = vpop.f32.mrb[0].mxu0
  %420 = vdwg.mxu0
  %v421 = vxor.u32 %v418, 2147483648
  %v422 = vmul.f32 %v421, 1.442695
  %v423 = vpow.pop %v422
  %v424 = vadd.f32 %v423, 1.0
  %v425 = vrcp.pop %v424
  %v426 = vmul.f32 1.0, %v425
  %v427 = vld [vmem:[%s5] sm:$0xff]
  %v428 = vld [vmem:[%s5 + $0x8] sm:$0xff]
  %v429 = vld [vmem:[%s5 + $0x10] sm:$0xff]
  %v430 = vld [vmem:[%s5 + $0x18] sm:$0xff]
  %v431 = vld [vmem:[%s5 + $0x20] sm:$0xff]
  %v432 = vld [vmem:[%s5 + $0x28] sm:$0xff]
  %v433 = vld [vmem:[%s5 + $0x30] sm:$0xff]
  %v434 = vld [vmem:[%s5 + $0x38] sm:$0xff]
  %v435 = vld [vmem:[%s5 + $0x40] sm:$0xff]
  %v436 = vld [vmem:[%s5 + $0x48] sm:$0xff]
  %v437 = vld [vmem:[%s5 + $0x50] sm:$0xff]
  %v438 = vld [vmem:[%s5 + $0x58] sm:$0xff]
  %v439 = vld [vmem:[%s5 + $0x60] sm:$0xff]
  %v440 = vld [vmem:[%s5 + $0x68] sm:$0xff]
  %v441 = vld [vmem:[%s5 + $0x70] sm:$0xff]
  %v442 = vld [vmem:[%s5 + $0x78] sm:$0xff]
  %v443 = vld [vmem:[%s6] sm:$0x1]
  %v445 = vlaneseq
  %v446 = vshrl.u32 %v445, 7
  %v447 = vsub.s32 0, %v446
  %v448 = vrot.slane %v443, %v447
  %450 = vmatprep.subr.mxu0 0.0
  %451 = vmatpush1.msra.mxu0 %v427
  %452 = vmatprep.subr.mxu0 0.0
  %453 = vmatpush1.msra.mxu0 %v428
  %454 = vmatprep.subr.mxu0 0.0
  %455 = vmatpush1.msra.mxu0 %v429
  %456 = vmatprep.subr.mxu0 0.0
  %457 = vmatpush1.msra.mxu0 %v430
  %458 = vmatprep.subr.mxu0 0.0
  %459 = vmatpush1.msra.mxu0 %v431
  %460 = vmatprep.subr.mxu0 0.0
  %461 = vmatpush1.msra.mxu0 %v432
  %462 = vmatprep.subr.mxu0 0.0
  %463 = vmatpush1.msra.mxu0 %v433
  %464 = vmatprep.subr.mxu0 0.0
  %465 = vmatpush1.msra.mxu0 %v434
  %466 = vmatprep.subr.mxu0 0.0
  %467 = vmatpush1.msra.mxu0 %v435
  %468 = vmatprep.subr.mxu0 0.0
  %469 = vmatpush1.msra.mxu0 %v436
  %470 = vmatprep.subr.mxu0 0.0
  %471 = vmatpush1.msra.mxu0 %v437
  %472 = vmatprep.subr.mxu0 0.0
  %473 = vmatpush1.msra.mxu0 %v438
  %474 = vmatprep.subr.mxu0 0.0
  %475 = vmatpush1.msra.mxu0 %v439
  %476 = vmatprep.subr.mxu0 0.0
  %477 = vmatpush1.msra.mxu0 %v440
  %478 = vmatprep.subr.mxu0 0.0
  %479 = vmatpush1.msra.mxu0 %v441
  %480 = vmatprep.subr.mxu0 0.0
  %481 = vmatpush1.msra.mxu0 %v442
  %482 = vmatprep.subr.mxu0 0.0
  %483 = vmatpush1.msra.mxu0 0.0
  %484 = vmatprep.subr.mxu0 0.0
  %485 = vmatpush1.msra.mxu0 0.0
  %486 = vmatprep.subr.mxu0 0.0
  %487 = vmatpush1.msra.mxu0 0.0
  %488 = vmatprep.subr.mxu0 0.0
  %489 = vmatpush1.msra.mxu0 0.0
  %490 = vmatprep.subr.mxu0 0.0
  %491 = vmatpush1.msra.mxu0 0.0
  %492 = vmatprep.subr.mxu0 0.0
  %493 = vmatpush1.msra.mxu0 0.0
  %494 = vmatprep.subr.mxu0 0.0
  %495 = vmatpush1.msra.mxu0 0.0
  %496 = vmatprep.subr.mxu0 0.0
  %497 = vmatpush1.msra.mxu0 0.0
  %498 = vmatprep.subr.mxu0 0.0
  %499 = vmatpush1.msra.mxu0 0.0
  %500 = vmatprep.subr.mxu0 0.0
  %501 = vmatpush1.msra.mxu0 0.0
  %502 = vmatprep.subr.mxu0 0.0
  %503 = vmatpush1.msra.mxu0 0.0
  %504 = vmatprep.subr.mxu0 0.0
  %505 = vmatpush1.msra.mxu0 0.0
  %506 = vmatprep.subr.mxu0 0.0
  %507 = vmatpush1.msra.mxu0 0.0
  %508 = vmatprep.subr.mxu0 0.0
  %509 = vmatpush1.msra.mxu0 0.0
  %510 = vmatprep.subr.mxu0 0.0
  %511 = vmatpush1.msra.mxu0 0.0
  %512 = vmatprep.subr.mxu0 0.0
  %513 = vmatpush1.msra.mxu0 0.0
  %514 = vmatprep.mubr.f32.mxu0 0.0
  %515 = vmatmul.mubr.f32.gmra.mrb[0].mxu0 %v426
  %v516 = vpop.f32.mrb[0].mxu0
  %v517 = vadd.f32 %v448, %v516
  %v518 = vpop.f32.mrb[0].mxu0
  %519 = vdwg.mxu0
  %520 = vst [vmem:[%s7] sm:$0xff] %v517
  // Predicated region
  $region30: #{dnn_forward.1} parent=0 // pred_check
    _
  $region31: #{dnn_forward.1} parent=0 // pred_check_branch
    %522 = sbr.rel (0) target = $region33
  $region32: #{dnn_forward.1} parent=0 // pred_region
    _
  $region33: #{dnn_forward.1} parent=0 // pred_fallthru
    _
  // Predicated region
  $region34: #{dnn_forward.1} parent=0 // pred_check
    _
  $region35: #{dnn_forward.1} parent=0 // pred_check_branch
    %524 = sbr.rel (0) target = $region37
  $region36: #{dnn_forward.1} parent=0 // pred_region
    _
  $region37: #{dnn_forward.1} parent=0 // pred_fallthru
    _

</llo_original>
